<compile_context>
chip_gen: v5e
topology: v5e:2x2
jax: 0.10.0
libtpu: 0.0.40
codegen_flags: <defaults>
</compile_context>

<pallas_src>
import functools
import math

import jax
import jax.numpy as jnp
from jax import lax
from jax.experimental import pallas as pl
from jax.experimental.pallas import tpu as pltpu


def _round_up(x, m):
    return ((x + m - 1) // m) * m


def _make_nffn_kernel(*, eps, swiglu, use_alpha, norm_affine):
    def kernel(*refs):
        it = iter(refs)
        x_ref = next(it)
        res_ref = next(it)
        g_ref = next(it) if norm_affine else None
        b_ref = next(it) if norm_affine else None
        w1_ref = next(it)
        w3_ref = next(it) if swiglu else None
        w2_ref = next(it)
        a_ref = next(it) if use_alpha else None
        o_ref = next(it)
        xn_ref = next(it)   # (TM, D) cached LayerNorm output, compute dtype
        acc_ref = next(it)  # (TM, D) f32 fc2 accumulator

        k = pl.program_id(1)

        # ---- prologue: LayerNorm once per row tile, zero the accumulator ----
        @pl.when(k == 0)
        def _():
            x = x_ref[...].astype(jnp.float32)
            mean = jnp.mean(x, axis=-1, keepdims=True)
            xc = x - mean
            var = jnp.mean(xc * xc, axis=-1, keepdims=True)
            xn = xc * lax.rsqrt(var + eps)
            if norm_affine:
                xn = (xn * g_ref[...].astype(jnp.float32)
                      + b_ref[...].astype(jnp.float32))
            xn_ref[...] = xn.astype(xn_ref.dtype)
            acc_ref[...] = jnp.zeros_like(acc_ref)

        # ---- per hidden-tile contribution: silu(xn@w1_k)[*(xn@w3_k)] @ w2_k ----
        xn = xn_ref[...]                      # native (e.g. bf16) MXU operand
        h1 = jnp.dot(xn, w1_ref[...], preferred_element_type=jnp.float32)
        h = h1 * jax.nn.sigmoid(h1)           # SiLU in f32 (exp on EUP slot)
        if swiglu:
            h3 = jnp.dot(xn, w3_ref[...], preferred_element_type=jnp.float32)
            h = h * h3
        # (hidden_dropout: identity in eval mode)
        acc_ref[...] += jnp.dot(h.astype(w2_ref.dtype), w2_ref[...],
                                preferred_element_type=jnp.float32)

        # ---- epilogue: rescale + residual, single lane-dense store ----
        @pl.when(k == pl.num_programs(1) - 1)
        def _():
            y = acc_ref[...]
            if use_alpha:
                y = y * a_ref[...].astype(jnp.float32)
            # (dropout: identity in eval mode)
            o_ref[...] = (y + res_ref[...].astype(jnp.float32)).astype(o_ref.dtype)

    return kernel


def normalized_ffn_forward(x, residual, params, *, eps=1e-5, swiglu=False,
                           norm_affine=True, tile_rows=256, tile_hidden=512):
    """x, residual: (..., model_dim). Returns same shape/dtype as x.

    params:
      w1t: (D, H) = fc1.weight.T      w2t: (H, D) = fc2.weight.T
      w3t: (D, H) = fc3.weight.T      (only when swiglu)
      gamma/beta: (D,)                (only when norm_affine)
      alpha: (D,) or None             (rescale)
    """
    orig_shape = x.shape
    D = orig_shape[-1]
    rows = math.prod(orig_shape[:-1])
    x2 = x.reshape(rows, D)
    r2 = residual.reshape(rows, D)

    w1t = params["w1t"]
    w2t = params["w2t"]
    w3t = params.get("w3t") if swiglu else None
    alpha = params.get("alpha")
    use_alpha = alpha is not None
    H = w1t.shape[1]
    if swiglu:
        assert w3t is not None, "swiglu=True requires params['w3t']"

    # ---- tile sizes ----
    TM = max(8, min(tile_rows, _round_up(rows, 8)))
    rows_pad = _round_up(rows, TM)
    if tile_hidden >= H:
        TH = H
    else:
        TH = max(128, (tile_hidden // 128) * 128)
    H_pad = _round_up(H, TH)

    # ---- zero padding (semantics-neutral: padded rows are sliced off,
    #      padded hidden columns contribute silu(0)*... @ 0 = 0) ----
    if rows_pad != rows:
        pad = rows_pad - rows
        x2 = jnp.pad(x2, ((0, pad), (0, 0)))
        r2 = jnp.pad(r2, ((0, pad), (0, 0)))
    if H_pad != H:
        hp = H_pad - H
        w1t = jnp.pad(w1t, ((0, 0), (0, hp)))
        if swiglu:
            w3t = jnp.pad(w3t, ((0, 0), (0, hp)))
        w2t = jnp.pad(w2t, ((0, hp), (0, 0)))

    grid = (rows_pad // TM, H_pad // TH)

    row_spec = pl.BlockSpec((TM, D), lambda i, k: (i, 0))
    vec_spec = pl.BlockSpec((1, D), lambda i, k: (0, 0))
    w_in_spec = pl.BlockSpec((D, TH), lambda i, k: (0, k))
    w_out_spec = pl.BlockSpec((TH, D), lambda i, k: (k, 0))

    # Build operands/in_specs conditionally -- never DMA dead arrays.
    operands = [x2, r2]
    in_specs = [row_spec, row_spec]
    if norm_affine:
        operands += [params["gamma"].reshape(1, D), params["beta"].reshape(1, D)]
        in_specs += [vec_spec, vec_spec]
    operands.append(w1t)
    in_specs.append(w_in_spec)
    if swiglu:
        operands.append(w3t)
        in_specs.append(w_in_spec)
    operands.append(w2t)
    in_specs.append(w_out_spec)
    if use_alpha:
        operands.append(alpha.reshape(1, D))
        in_specs.append(vec_spec)

    compute_dtype = w1t.dtype  # MXU operands stay in the weights' native dtype

    # ---- VMEM budget estimate -> explicit limit (re-derive per generation) ----
    def nbytes(shape, dt):
        return math.prod(shape) * jnp.dtype(dt).itemsize

    est = 2 * (2 * nbytes((TM, D), x.dtype) + nbytes((TM, D), x.dtype))   # x, res, out (dbl buf)
    est += 2 * ((2 if swiglu else 1) * nbytes((D, TH), w1t.dtype)
                + nbytes((TH, D), w2t.dtype))                             # weight slabs (dbl buf)
    est += nbytes((TM, D), compute_dtype) + nbytes((TM, D), jnp.float32)  # scratch
    vmem_limit = min(max(int(est * 1.5), 32 * 1024 * 1024), 96 * 1024 * 1024)

    kernel = _make_nffn_kernel(eps=eps, swiglu=swiglu, use_alpha=use_alpha,
                               norm_affine=norm_affine)

    out = pl.pallas_call(
        kernel,
        out_shape=jax.ShapeDtypeStruct((rows_pad, D), x.dtype),
        grid_spec=pltpu.PrefetchScalarGridSpec(
            num_scalar_prefetch=0,
            grid=grid,
            in_specs=in_specs,
            out_specs=row_spec,
            scratch_shapes=[
                pltpu.VMEM((TM, D), compute_dtype),   # cached LayerNorm output
                pltpu.VMEM((TM, D), jnp.float32),     # fc2 accumulator
            ],
        ),
        compiler_params=pltpu.CompilerParams(
            dimension_semantics=("parallel", "arbitrary"),
            vmem_limit_bytes=vmem_limit,
        ),
    )(*operands)

    if rows_pad != rows:
        out = out[:rows]
    return out.reshape(orig_shape)


def _reference(x, residual, params, *, eps, swiglu, norm_affine):
    xf = x.astype(jnp.float32)
    mean = jnp.mean(xf, axis=-1, keepdims=True)
    xc = xf - mean
    var = jnp.mean(xc * xc, axis=-1, keepdims=True)
    xn = xc * lax.rsqrt(var + eps)
    if norm_affine:
        xn = xn * params["gamma"] + params["beta"]
    h1 = xn @ params["w1t"].astype(jnp.float32)
    h = jax.nn.silu(h1)
    if swiglu:
        h = h * (xn @ params["w3t"].astype(jnp.float32))
    y = h @ params["w2t"].astype(jnp.float32)
    if params.get("alpha") is not None:
        y = y * params["alpha"]
    return (y + residual.astype(jnp.float32)).astype(x.dtype)


if __name__ == "__main__":
    key = jax.random.PRNGKey(0)
    ks = jax.random.split(key, 12)
    eps = 1e-5

    # ---- Test 1: swiglu + rescale, lane-aligned dims, exercises both grid axes
    B, S, D, H = 2, 16, 128, 256
    x = jax.random.normal(ks[0], (B, S, D), dtype=jnp.float32)
    residual = jax.random.normal(ks[1], (B, S, D), dtype=jnp.float32)
    params = {
        "gamma": jnp.ones((D,), jnp.float32),
        "beta": jnp.zeros((D,), jnp.float32),
        "w1t": (0.02 * jax.random.normal(ks[2], (H, D), jnp.float32)).T,
        "w3t": (0.02 * jax.random.normal(ks[3], (H, D), jnp.float32)).T,
        "w2t": (0.02 * jax.random.normal(ks[4], (D, H), jnp.float32)).T,
        "alpha": jnp.full((D,), 0.5, jnp.float32),
    }
    out = normalized_ffn_forward(x, residual, params, eps=eps, swiglu=True,
                                 norm_affine=True, tile_rows=16, tile_hidden=128)
    out = jax.block_until_ready(out)
    ref = _reference(x, residual, params, eps=eps, swiglu=True, norm_affine=True)
    assert out.shape == x.shape and out.dtype == x.dtype
    assert jnp.allclose(out, ref, atol=1e-4, rtol=1e-4), "test1 mismatch"

    # ---- Test 2: no swiglu, no rescale, rows not divisible by tile (padding path)
    B2, S2, D2, H2 = 1, 10, 128, 256
    x2 = jax.random.normal(ks[5], (B2, S2, D2), dtype=jnp.float32)
    r2 = jax.random.normal(ks[6], (B2, S2, D2), dtype=jnp.float32)
    params2 = {
        "gamma": 1.0 + 0.1 * jax.random.normal(ks[7], (D2,), jnp.float32),
        "beta": 0.1 * jax.random.normal(ks[8], (D2,), jnp.float32),
        "w1t": (0.02 * jax.random.normal(ks[9], (H2, D2), jnp.float32)).T,
        "w2t": (0.02 * jax.random.normal(ks[10], (D2, H2), jnp.float32)).T,
        "alpha": None,
    }
    out2 = normalized_ffn_forward(x2, r2, params2, eps=eps, swiglu=False,
                                  norm_affine=True)
    out2 = jax.block_until_ready(out2)
    ref2 = _reference(x2, r2, params2, eps=eps, swiglu=False, norm_affine=True)
    assert out2.shape == x2.shape and out2.dtype == x2.dtype
    assert jnp.allclose(out2, ref2, atol=1e-4, rtol=1e-4), "test2 mismatch"

    print("KERNEL_OK")
</pallas_src>

<mosaic_0001>
module attributes {stable_mosaic.version = 11 : i64} {
  func.func @kernel(%arg0: i32, %arg1: i32, %arg2: memref<16x128xf32, #tpu.memory_space<vmem>>, %arg3: memref<16x128xf32, #tpu.memory_space<vmem>>, %arg4: memref<1x128xf32, #tpu.memory_space<vmem>>, %arg5: memref<1x128xf32, #tpu.memory_space<vmem>>, %arg6: memref<128x128xf32, #tpu.memory_space<vmem>>, %arg7: memref<128x128xf32, #tpu.memory_space<vmem>>, %arg8: memref<128x128xf32, #tpu.memory_space<vmem>>, %arg9: memref<1x128xf32, #tpu.memory_space<vmem>>, %arg10: memref<16x128xf32, #tpu.memory_space<vmem>>, %arg11: memref<16x128xf32, #tpu.memory_space<vmem>>, %arg12: memref<16x128xf32, #tpu.memory_space<vmem>>) attributes {dimension_semantics = [#tpu.dimension_semantics<parallel>, #tpu.dimension_semantics<arbitrary>], iteration_bounds = array<i64: 2, 2>, scalar_prefetch = 0 : i64, scratch_operands = 2 : i64, tpu.core_type = #tpu.core_type<tc>, window_params = [{transform_indices = @transform_0, window_bounds = array<i64: 16, 128>}, {transform_indices = @transform_1, window_bounds = array<i64: 16, 128>}, {pipeline_mode = #tpu.pipeline_mode<synchronous>, transform_indices = @transform_2, window_bounds = array<i64: 1, 128>}, {pipeline_mode = #tpu.pipeline_mode<synchronous>, transform_indices = @transform_3, window_bounds = array<i64: 1, 128>}, {transform_indices = @transform_4, window_bounds = array<i64: 128, 128>}, {transform_indices = @transform_5, window_bounds = array<i64: 128, 128>}, {transform_indices = @transform_6, window_bounds = array<i64: 128, 128>}, {pipeline_mode = #tpu.pipeline_mode<synchronous>, transform_indices = @transform_7, window_bounds = array<i64: 1, 128>}, {transform_indices = @transform_8, window_bounds = array<i64: 16, 128>}]} {
    %c0_i32 = arith.constant 0 : i32
    %0 = arith.cmpi eq, %arg1, %c0_i32 : i32
    %1 = arith.extui %0 : i1 to i32
    %c0_i32_0 = arith.constant 0 : i32
    %2 = arith.cmpi ne, %1, %c0_i32_0 : i32
    scf.if %2 {
      %c0_16 = arith.constant 0 : index
      %c0_17 = arith.constant 0 : index
      %23 = vector.load %arg2[%c0_16, %c0_17] : memref<16x128xf32, #tpu.memory_space<vmem>>, vector<16x128xf32>
      %cst_18 = arith.constant dense<0.000000e+00> : vector<16xf32>
      %24 = vector.multi_reduction <add>, %23, %cst_18 [1] : vector<16x128xf32> to vector<16xf32>
      %25 = vector.shape_cast %24 : vector<16xf32> to vector<16x1xf32>
      %cst_19 = arith.constant 1.280000e+02 : f32
      %26 = vector.broadcast %cst_19 : f32 to vector<16x1xf32>
      %27 = arith.divf %25, %26 : vector<16x1xf32>
      %28 = vector.broadcast %27 : vector<16x1xf32> to vector<16x128xf32>
      %29 = arith.subf %23, %28 : vector<16x128xf32>
      %30 = arith.mulf %29, %29 : vector<16x128xf32>
      %cst_20 = arith.constant dense<0.000000e+00> : vector<16xf32>
      %31 = vector.multi_reduction <add>, %30, %cst_20 [1] : vector<16x128xf32> to vector<16xf32>
      %32 = vector.shape_cast %31 : vector<16xf32> to vector<16x1xf32>
      %cst_21 = arith.constant 1.280000e+02 : f32
      %33 = vector.broadcast %cst_21 : f32 to vector<16x1xf32>
      %34 = arith.divf %32, %33 : vector<16x1xf32>
      %cst_22 = arith.constant 9.99999974E-6 : f32
      %35 = vector.broadcast %cst_22 : f32 to vector<16x1xf32>
      %36 = arith.addf %34, %35 : vector<16x1xf32>
      %37 = math.rsqrt %36 : vector<16x1xf32>
      %38 = vector.broadcast %37 : vector<16x1xf32> to vector<16x128xf32>
      %39 = arith.mulf %29, %38 : vector<16x128xf32>
      %c0_23 = arith.constant 0 : index
      %c0_24 = arith.constant 0 : index
      %40 = vector.load %arg4[%c0_23, %c0_24] : memref<1x128xf32, #tpu.memory_space<vmem>>, vector<1x128xf32>
      %41 = vector.broadcast %40 : vector<1x128xf32> to vector<16x128xf32>
      %42 = arith.mulf %39, %41 : vector<16x128xf32>
      %c0_25 = arith.constant 0 : index
      %c0_26 = arith.constant 0 : index
      %43 = vector.load %arg5[%c0_25, %c0_26] : memref<1x128xf32, #tpu.memory_space<vmem>>, vector<1x128xf32>
      %44 = vector.broadcast %43 : vector<1x128xf32> to vector<16x128xf32>
      %45 = arith.addf %42, %44 : vector<16x128xf32>
      %c0_27 = arith.constant 0 : index
      %c0_28 = arith.constant 0 : index
      %46 = vector.load %arg11[%c0_27, %c0_28] : memref<16x128xf32, #tpu.memory_space<vmem>>, vector<16x128xf32>
      tpu.vector_store %arg11[%c0_27, %c0_28], %45 {strides = array<i32>} : memref<16x128xf32, #tpu.memory_space<vmem>>, vector<16x128xf32>,
      %cst_29 = arith.constant 0.000000e+00 : f32
      %47 = vector.broadcast %cst_29 : f32 to vector<16x128xf32>
      %c0_30 = arith.constant 0 : index
      %c0_31 = arith.constant 0 : index
      %48 = vector.load %arg12[%c0_30, %c0_31] : memref<16x128xf32, #tpu.memory_space<vmem>>, vector<16x128xf32>
      tpu.vector_store %arg12[%c0_30, %c0_31], %47 {strides = array<i32>} : memref<16x128xf32, #tpu.memory_space<vmem>>, vector<16x128xf32>,
    } else {
    }
    %c0 = arith.constant 0 : index
    %c0_1 = arith.constant 0 : index
    %3 = vector.load %arg11[%c0, %c0_1] : memref<16x128xf32, #tpu.memory_space<vmem>>, vector<16x128xf32>
    %c0_2 = arith.constant 0 : index
    %c0_3 = arith.constant 0 : index
    %4 = vector.load %arg6[%c0_2, %c0_3] : memref<128x128xf32, #tpu.memory_space<vmem>>, vector<128x128xf32>
    %cst = arith.constant dense<0.000000e+00> : vector<16x128xf32>
    %5 = tpu.matmul %3, %4, %cst {dimension_numbers = #tpu.dot_dimension_numbers<[1], [0], [0], [1], [0, 0, 1, 1], [], []>} : vector<16x128xf32>, vector<128x128xf32>, vector<16x128xf32> -> vector<16x128xf32>
    %6 = arith.negf %5 : vector<16x128xf32>
    %7 = math.exp %6 : vector<16x128xf32>
    %cst_4 = arith.constant 1.000000e+00 : f32
    %8 = vector.broadcast %cst_4 : f32 to vector<16x128xf32>
    %9 = arith.addf %8, %7 : vector<16x128xf32>
    %10 = arith.divf %8, %9 : vector<16x128xf32>
    %11 = arith.mulf %5, %10 : vector<16x128xf32>
    %c0_5 = arith.constant 0 : index
    %c0_6 = arith.constant 0 : index
    %12 = vector.load %arg7[%c0_5, %c0_6] : memref<128x128xf32, #tpu.memory_space<vmem>>, vector<128x128xf32>
    %cst_7 = arith.constant dense<0.000000e+00> : vector<16x128xf32>
    %13 = tpu.matmul %3, %12, %cst_7 {dimension_numbers = #tpu.dot_dimension_numbers<[1], [0], [0], [1], [0, 0, 1, 1], [], []>} : vector<16x128xf32>, vector<128x128xf32>, vector<16x128xf32> -> vector<16x128xf32>
    %14 = arith.mulf %11, %13 : vector<16x128xf32>
    %c0_8 = arith.constant 0 : index
    %c0_9 = arith.constant 0 : index
    %15 = vector.load %arg12[%c0_8, %c0_9] : memref<16x128xf32, #tpu.memory_space<vmem>>, vector<16x128xf32>
    %c0_10 = arith.constant 0 : index
    %c0_11 = arith.constant 0 : index
    %16 = vector.load %arg8[%c0_10, %c0_11] : memref<128x128xf32, #tpu.memory_space<vmem>>, vector<128x128xf32>
    %cst_12 = arith.constant dense<0.000000e+00> : vector<16x128xf32>
    %17 = tpu.matmul %14, %16, %cst_12 {dimension_numbers = #tpu.dot_dimension_numbers<[1], [0], [0], [1], [0, 0, 1, 1], [], []>} : vector<16x128xf32>, vector<128x128xf32>, vector<16x128xf32> -> vector<16x128xf32>
    %18 = arith.addf %15, %17 : vector<16x128xf32>
    %c0_13 = arith.constant 0 : index
    %c0_14 = arith.constant 0 : index
    %19 = vector.load %arg12[%c0_13, %c0_14] : memref<16x128xf32, #tpu.memory_space<vmem>>, vector<16x128xf32>
    tpu.vector_store %arg12[%c0_13, %c0_14], %18 {strides = array<i32>} : memref<16x128xf32, #tpu.memory_space<vmem>>, vector<16x128xf32>,
    %c1_i32 = arith.constant 1 : i32
    %20 = arith.cmpi eq, %arg1, %c1_i32 : i32
    %21 = arith.extui %20 : i1 to i32
    %c0_i32_15 = arith.constant 0 : i32
    %22 = arith.cmpi ne, %21, %c0_i32_15 : i32
    scf.if %22 {
      %c0_16 = arith.constant 0 : index
      %c0_17 = arith.constant 0 : index
      %23 = vector.load %arg12[%c0_16, %c0_17] : memref<16x128xf32, #tpu.memory_space<vmem>>, vector<16x128xf32>
      %c0_18 = arith.constant 0 : index
      %c0_19 = arith.constant 0 : index
      %24 = vector.load %arg9[%c0_18, %c0_19] : memref<1x128xf32, #tpu.memory_space<vmem>>, vector<1x128xf32>
      %25 = vector.broadcast %24 : vector<1x128xf32> to vector<16x128xf32>
      %26 = arith.mulf %23, %25 : vector<16x128xf32>
      %c0_20 = arith.constant 0 : index
      %c0_21 = arith.constant 0 : index
      %27 = vector.load %arg3[%c0_20, %c0_21] : memref<16x128xf32, #tpu.memory_space<vmem>>, vector<16x128xf32>
      %28 = arith.addf %26, %27 : vector<16x128xf32>
      %c0_22 = arith.constant 0 : index
      %c0_23 = arith.constant 0 : index
      %29 = vector.load %arg10[%c0_22, %c0_23] : memref<16x128xf32, #tpu.memory_space<vmem>>, vector<16x128xf32>
      tpu.vector_store %arg10[%c0_22, %c0_23], %28 {strides = array<i32>} : memref<16x128xf32, #tpu.memory_space<vmem>>, vector<16x128xf32>,
    } else {
    }
    return
  }
  func.func @transform_0(%arg0: i32, %arg1: i32) -> (i32, i32) {
    %c0_i32 = arith.constant 0 : i32
    %c0_i32_0 = arith.constant 0 : i32
    return %arg0, %c0_i32 : i32, i32
  }
  func.func @transform_1(%arg0: i32, %arg1: i32) -> (i32, i32) {
    %c0_i32 = arith.constant 0 : i32
    %c0_i32_0 = arith.constant 0 : i32
    return %arg0, %c0_i32 : i32, i32
  }
  func.func @transform_2(%arg0: i32, %arg1: i32) -> (i32, i32) {
    %c0_i32 = arith.constant 0 : i32
    %c0_i32_0 = arith.constant 0 : i32
    %c0_i32_1 = arith.constant 0 : i32
    return %c0_i32, %c0_i32_0 : i32, i32
  }
  func.func @transform_3(%arg0: i32, %arg1: i32) -> (i32, i32) {
    %c0_i32 = arith.constant 0 : i32
    %c0_i32_0 = arith.constant 0 : i32
    %c0_i32_1 = arith.constant 0 : i32
    return %c0_i32, %c0_i32_0 : i32, i32
  }
  func.func @transform_4(%arg0: i32, %arg1: i32) -> (i32, i32) {
    %c0_i32 = arith.constant 0 : i32
    %c0_i32_0 = arith.constant 0 : i32
    return %c0_i32, %arg1 : i32, i32
  }
  func.func @transform_5(%arg0: i32, %arg1: i32) -> (i32, i32) {
    %c0_i32 = arith.constant 0 : i32
    %c0_i32_0 = arith.constant 0 : i32
    return %c0_i32, %arg1 : i32, i32
  }
  func.func @transform_6(%arg0: i32, %arg1: i32) -> (i32, i32) {
    %c0_i32 = arith.constant 0 : i32
    %c0_i32_0 = arith.constant 0 : i32
    return %arg1, %c0_i32 : i32, i32
  }
  func.func @transform_7(%arg0: i32, %arg1: i32) -> (i32, i32) {
    %c0_i32 = arith.constant 0 : i32
    %c0_i32_0 = arith.constant 0 : i32
    %c0_i32_1 = arith.constant 0 : i32
    return %c0_i32, %c0_i32_0 : i32, i32
  }
  func.func @transform_8(%arg0: i32, %arg1: i32) -> (i32, i32) {
    %c0_i32 = arith.constant 0 : i32
    %c0_i32_0 = arith.constant 0 : i32
    return %arg0, %c0_i32 : i32, i32
  }
}

</mosaic_0001>

<llo_original>
// kernel: tpu_custom_call.1
$region0: #{tpu_custom_call.1}
  #allocation0 [shape = 'u32[]', space=smem, size = 0x4, offset = 0x4, fixed_abs, tag = 'smem constant byte address 0x4 - core index']
  #allocation1 [shape = 'u32[72,128]{1,0:T(1,128)}', space=vmem, size = 0x9000, scoped, tag = 'internal scratch']
  #allocation2 [shape = 'f32[16,128]{1,0:T(8,128)}', space=vmem, size = 0x2000, scoped, tag = 'scratch operand']
  #allocation3 [shape = 'f32[16,128]{1,0:T(8,128)}', space=vmem, size = 0x2000, scoped, tag = 'scratch operand']
  %s0 = inlined_call_operand.hbm [shape: f32[32,128], index: 0, kind: input, shape index: {}]
  %s1 = inlined_call_operand.hbm [shape: f32[32,128], index: 1, kind: input, shape index: {}]
  %s2 = inlined_call_operand.vmem [shape: f32[1,128], index: 2, kind: input, shape index: {}]
  %s3 = inlined_call_operand.vmem [shape: f32[1,128], index: 3, kind: input, shape index: {}]
  %s4 = inlined_call_operand.hbm [shape: f32[128,256], index: 4, kind: input, shape index: {}]
  %s5 = inlined_call_operand.hbm [shape: f32[128,256], index: 5, kind: input, shape index: {}]
  %s6 = inlined_call_operand.hbm [shape: f32[256,128], index: 6, kind: input, shape index: {}]
  %s7 = inlined_call_operand.vmem [shape: f32[1,128], index: 7, kind: input, shape index: {}]
  %s8 = inlined_call_operand.hbm [shape: f32[32,128], index: 8, kind: output, shape index: {}]
  %s9 = sld [smem:[#allocation0]]
  $region93: #{tpu_custom_call.1} parent=0
    _
  %s11 = ssub.s32 1, %s9
  %s12 = scalar_select 0, %s11, %s9
  $region1: #{tpu_custom_call.1} parent=0
    #allocation4 [shape = 'u8[16384]{0}', space=vmem, size = 0x4000, scoped, tag = 'input window, operand 0']
    #allocation5 [shape = 's32[2]{0}', space=sflag, size = 0x8, scoped, tag = 'scoped memory for tpu_custom_call.1']
    #allocation6 [shape = 's32[2]{0}', space=sflag, size = 0x8, scoped, tag = 'scoped memory for tpu_custom_call.1']
    #allocation7 [shape = 'u8[16384]{0}', space=vmem, size = 0x4000, scoped, tag = 'input window, operand 1']
    #allocation8 [shape = 's32[2]{0}', space=sflag, size = 0x8, scoped, tag = 'scoped memory for tpu_custom_call.1']
    #allocation9 [shape = 'u8[131072]{0}', space=vmem, size = 0x20000, scoped, tag = 'input window, operand 4']
    #allocation10 [shape = 'u8[131072]{0}', space=vmem, size = 0x20000, scoped, tag = 'input window, operand 5']
    #allocation11 [shape = 's32[2]{0}', space=sflag, size = 0x8, scoped, tag = 'scoped memory for tpu_custom_call.1']
    #allocation12 [shape = 'u8[131072]{0}', space=vmem, size = 0x20000, scoped, tag = 'input window, operand 6']
    #allocation13 [shape = 'u8[16384]{0}', space=vmem, size = 0x4000, scoped, tag = 'output window, operand 0']
    %13 = vsyncpa [#allocation5], 0
    %s14 = scalar_lea.sflag [#allocation5], 1
    %15 = vsyncpa %s14, 0
    %16 = vsyncpa [#allocation8], 0
    %s17 = scalar_lea.sflag [#allocation8], 1
    %18 = vsyncpa %s17, 0
    %19 = vsyncpa [#allocation11], 0
    %s20 = scalar_lea.sflag [#allocation11], 1
    %21 = vsyncpa %s20, 0
    %22 = vsyncpa [#allocation6], 0
    %s23 = scalar_lea.sflag [#allocation6], 1
    %24 = vsyncpa %s23, 0
    loop: start=0, step=1, limit=6
    $region2: #{tpu_custom_call.1} parent=1 // loop_pre_header
      _
    $region3: #{tpu_custom_call.1} parent=1 // loop_header
      %s26 = sphi 0, %s30
      %p27 = scmp.ge.s32.totalorder %s26, 6
      %s33 = sphi 0, %s45
      %s34 = sphi 0, %s41
      %s35 = sphi 0, %s33
      %s36 = sphi 0, %s34
      %s37 = sphi 0, %s35
      %s38 = sphi 0, %s36
      %s48 = sphi 0, %s50
      %s51 = sphi 0, %s48
      %s52 = sphi 0, %s51
      %s68 = sphi 0, %s52
      %s74 = sphi 0, %s76
      %s77 = sphi 0, %s74
      %s78 = sphi 0, %s77
      %s94 = sphi 0, %s78
      %s98 = sphi 0, %s98
      %s100 = sphi 0, %s98
      %s101 = sphi 0, %s100
      %s115 = sphi 0, %s101
      %s119 = sphi 0, %s119
      %s121 = sphi 0, %s119
      %s122 = sphi 0, %s121
      %s136 = sphi 0, %s122
      %s142 = sphi 0, %s144
      %s145 = sphi 0, %s142
      %s146 = sphi 0, %s145
      %s162 = sphi 0, %s146
      %s168 = sphi 0, %s170
      %s171 = sphi 0, %s168
      %s172 = sphi 0, %s171
      %s188 = sphi 0, %s172
      %s194 = sphi 0, %s196
      %s197 = sphi 0, %s194
      %s198 = sphi 0, %s197
      %s214 = sphi 0, %s198
      %s218 = sphi 0, %s218
      %s220 = sphi 0, %s218
      %s221 = sphi 0, %s220
      %s235 = sphi 0, %s221
      %s241 = sphi 0, %s243
      %s244 = sphi 0, %s241
      %s245 = sphi 0, %s244
      %s261 = sphi 0, %s245
    $region4: #{tpu_custom_call.1} parent=1 // loop_header_branch
      %29 = sbr.rel (%p27) target = $region8
    $region5: #{tpu_custom_call.1} parent=1 // loop_body
      %s31 = ssub.s32 %s26, 1
      %s32 = ssub.s32 %s26, 2
      %s39 = sadd.s32 1, %s34
      %p40 = scmp.ge.s32.totalorder %s39, 2
      %s41 = scalar_select %p40, 0, %s39
      %s42 = sadd.s32 1, %s33
      %s43 = scalar_select %p40, %s42, %s33
      %p44 = scmp.ge.s32.totalorder %s43, 2
      %s45 = scalar_select %p44, 0, %s43
      %s46 = ssub.s32 %s33, %s45
      %p47 = scmp.eq.s32.totalorder %s46, 0
      %s49 = sadd.s32 %s48, 1
      %s50 = scalar_select %p47, %s48, %s49
      %p53 = pneg %p47
      %p54 = scmp.eq.s32.totalorder %s26, 3
      %p55 = por %p53, %p54
      %p56 = scmp.ne.s32.totalorder %s48, %s51
      %p57 = scmp.eq.s32.totalorder %s26, 0
      %p58 = por %p56, %p57
      %p59 = scmp.ne.s32.totalorder %s48, %s51
      %p60 = scmp.eq.s32.totalorder %s31, 3
      %p61 = por %p59, %p60
      %p62 = scmp.ne.s32.totalorder %s51, %s52
      %p63 = scmp.eq.s32.totalorder %s31, 0
      %p64 = por %p62, %p63
      %p65 = scmp.ne.s32.totalorder %s51, %s52
      %p66 = scmp.eq.s32.totalorder %s32, 3
      %p67 = por %p65, %p66
      %p69 = scmp.ne.s32.totalorder %s52, %s68
      %p70 = scmp.eq.s32.totalorder %s32, 0
      %p71 = por %p69, %p70
      %s72 = ssub.s32 %s33, %s45
      %p73 = scmp.eq.s32.totalorder %s72, 0
      %s75 = sadd.s32 %s74, 1
      %s76 = scalar_select %p73, %s74, %s75
      %p79 = pneg %p73
      %p80 = scmp.eq.s32.totalorder %s26, 3
      %p81 = por %p79, %p80
      %p82 = scmp.ne.s32.totalorder %s74, %s77
      %p83 = scmp.eq.s32.totalorder %s26, 0
      %p84 = por %p82, %p83
      %p85 = scmp.ne.s32.totalorder %s74, %s77
      %p86 = scmp.eq.s32.totalorder %s31, 3
      %p87 = por %p85, %p86
      %p88 = scmp.ne.s32.totalorder %s77, %s78
      %p89 = scmp.eq.s32.totalorder %s31, 0
      %p90 = por %p88, %p89
      %p91 = scmp.ne.s32.totalorder %s77, %s78
      %p92 = scmp.eq.s32.totalorder %s32, 3
      %p93 = por %p91, %p92
      %p95 = scmp.ne.s32.totalorder %s78, %s94
      %p96 = scmp.eq.s32.totalorder %s32, 0
      %p97 = por %p95, %p96
      %s99 = sadd.s32 %s98, 1
      %p102 = scmp.eq.s32.totalorder %s26, 3
      %p103 = scmp.ne.s32.totalorder %s98, %s100
      %p104 = scmp.eq.s32.totalorder %s26, 0
      %p105 = por %p103, %p104
      %p106 = scmp.ne.s32.totalorder %s98, %s100
      %p107 = scmp.eq.s32.totalorder %s31, 3
      %p108 = por %p106, %p107
      %p109 = scmp.ne.s32.totalorder %s100, %s101
      %p110 = scmp.eq.s32.totalorder %s31, 0
      %p111 = por %p109, %p110
      %p112 = scmp.ne.s32.totalorder %s100, %s101
      %p113 = scmp.eq.s32.totalorder %s32, 3
      %p114 = por %p112, %p113
      %p116 = scmp.ne.s32.totalorder %s101, %s115
      %p117 = scmp.eq.s32.totalorder %s32, 0
      %p118 = por %p116, %p117
      %s120 = sadd.s32 %s119, 1
      %p123 = scmp.eq.s32.totalorder %s26, 3
      %p124 = scmp.ne.s32.totalorder %s119, %s121
      %p125 = scmp.eq.s32.totalorder %s26, 0
      %p126 = por %p124, %p125
      %p127 = scmp.ne.s32.totalorder %s119, %s121
      %p128 = scmp.eq.s32.totalorder %s31, 3
      %p129 = por %p127, %p128
      %p130 = scmp.ne.s32.totalorder %s121, %s122
      %p131 = scmp.eq.s32.totalorder %s31, 0
      %p132 = por %p130, %p131
      %p133 = scmp.ne.s32.totalorder %s121, %s122
      %p134 = scmp.eq.s32.totalorder %s32, 3
      %p135 = por %p133, %p134
      %p137 = scmp.ne.s32.totalorder %s122, %s136
      %p138 = scmp.eq.s32.totalorder %s32, 0
      %p139 = por %p137, %p138
      %s140 = ssub.s32 %s34, %s41
      %p141 = scmp.eq.s32.totalorder %s140, 0
      %s143 = sadd.s32 %s142, 1
      %s144 = scalar_select %p141, %s142, %s143
      %p147 = pneg %p141
      %p148 = scmp.eq.s32.totalorder %s26, 3
      %p149 = por %p147, %p148
      %p150 = scmp.ne.s32.totalorder %s142, %s145
      %p151 = scmp.eq.s32.totalorder %s26, 0
      %p152 = por %p150, %p151
      %p153 = scmp.ne.s32.totalorder %s142, %s145
      %p154 = scmp.eq.s32.totalorder %s31, 3
      %p155 = por %p153, %p154
      %p156 = scmp.ne.s32.totalorder %s145, %s146
      %p157 = scmp.eq.s32.totalorder %s31, 0
      %p158 = por %p156, %p157
      %p159 = scmp.ne.s32.totalorder %s145, %s146
      %p160 = scmp.eq.s32.totalorder %s32, 3
      %p161 = por %p159, %p160
      %p163 = scmp.ne.s32.totalorder %s146, %s162
      %p164 = scmp.eq.s32.totalorder %s32, 0
      %p165 = por %p163, %p164
      %s166 = ssub.s32 %s34, %s41
      %p167 = scmp.eq.s32.totalorder %s166, 0
      %s169 = sadd.s32 %s168, 1
      %s170 = scalar_select %p167, %s168, %s169
      %p173 = pneg %p167
      %p174 = scmp.eq.s32.totalorder %s26, 3
      %p175 = por %p173, %p174
      %p176 = scmp.ne.s32.totalorder %s168, %s171
      %p177 = scmp.eq.s32.totalorder %s26, 0
      %p178 = por %p176, %p177
      %p179 = scmp.ne.s32.totalorder %s168, %s171
      %p180 = scmp.eq.s32.totalorder %s31, 3
      %p181 = por %p179, %p180
      %p182 = scmp.ne.s32.totalorder %s171, %s172
      %p183 = scmp.eq.s32.totalorder %s31, 0
      %p184 = por %p182, %p183
      %p185 = scmp.ne.s32.totalorder %s171, %s172
      %p186 = scmp.eq.s32.totalorder %s32, 3
      %p187 = por %p185, %p186
      %p189 = scmp.ne.s32.totalorder %s172, %s188
      %p190 = scmp.eq.s32.totalorder %s32, 0
      %p191 = por %p189, %p190
      %s192 = ssub.s32 %s34, %s41
      %p193 = scmp.eq.s32.totalorder %s192, 0
      %s195 = sadd.s32 %s194, 1
      %s196 = scalar_select %p193, %s194, %s195
      %p199 = pneg %p193
      %p200 = scmp.eq.s32.totalorder %s26, 3
      %p201 = por %p199, %p200
      %p202 = scmp.ne.s32.totalorder %s194, %s197
      %p203 = scmp.eq.s32.totalorder %s26, 0
      %p204 = por %p202, %p203
      %p205 = scmp.ne.s32.totalorder %s194, %s197
      %p206 = scmp.eq.s32.totalorder %s31, 3
      %p207 = por %p205, %p206
      %p208 = scmp.ne.s32.totalorder %s197, %s198
      %p209 = scmp.eq.s32.totalorder %s31, 0
      %p210 = por %p208, %p209
      %p211 = scmp.ne.s32.totalorder %s197, %s198
      %p212 = scmp.eq.s32.totalorder %s32, 3
      %p213 = por %p211, %p212
      %p215 = scmp.ne.s32.totalorder %s198, %s214
      %p216 = scmp.eq.s32.totalorder %s32, 0
      %p217 = por %p215, %p216
      %s219 = sadd.s32 %s218, 1
      %p222 = scmp.eq.s32.totalorder %s26, 3
      %p223 = scmp.ne.s32.totalorder %s218, %s220
      %p224 = scmp.eq.s32.totalorder %s26, 0
      %p225 = por %p223, %p224
      %p226 = scmp.ne.s32.totalorder %s218, %s220
      %p227 = scmp.eq.s32.totalorder %s31, 3
      %p228 = por %p226, %p227
      %p229 = scmp.ne.s32.totalorder %s220, %s221
      %p230 = scmp.eq.s32.totalorder %s31, 0
      %p231 = por %p229, %p230
      %p232 = scmp.ne.s32.totalorder %s220, %s221
      %p233 = scmp.eq.s32.totalorder %s32, 3
      %p234 = por %p232, %p233
      %p236 = scmp.ne.s32.totalorder %s221, %s235
      %p237 = scmp.eq.s32.totalorder %s32, 0
      %p238 = por %p236, %p237
      %s239 = ssub.s32 %s33, %s45
      %p240 = scmp.eq.s32.totalorder %s239, 0
      %s242 = sadd.s32 %s241, 1
      %s243 = scalar_select %p240, %s241, %s242
      %p246 = pneg %p240
      %p247 = scmp.eq.s32.totalorder %s26, 3
      %p248 = por %p246, %p247
      %p249 = scmp.ne.s32.totalorder %s241, %s244
      %p250 = scmp.eq.s32.totalorder %s26, 0
      %p251 = por %p249, %p250
      %p252 = scmp.ne.s32.totalorder %s241, %s244
      %p253 = scmp.eq.s32.totalorder %s31, 3
      %p254 = por %p252, %p253
      %p255 = scmp.ne.s32.totalorder %s244, %s245
      %p256 = scmp.eq.s32.totalorder %s31, 0
      %p257 = por %p255, %p256
      %p258 = scmp.ne.s32.totalorder %s244, %s245
      %p259 = scmp.eq.s32.totalorder %s32, 3
      %p260 = por %p258, %p259
      %p262 = scmp.ne.s32.totalorder %s245, %s261
      %p263 = scmp.eq.s32.totalorder %s32, 0
      %p264 = por %p262, %p263
      %p265 = scmp.le.s32.totalorder 1, %s26
      %p266 = scmp.lt.s32.totalorder %s26, 5
      %p267 = pnand %p265, %p266
      %p268 = pneg %p267
      // Predicated region
      $region9: #{tpu_custom_call.1} parent=5 // pred_check
        _
      $region10: #{tpu_custom_call.1} parent=5 // pred_check_branch
        %270 = sbr.rel (%p267) target = $region12
      $region11: #{tpu_custom_call.1} parent=5 // pred_region
        %s271 = ssub.s32 %s26, 1
        // Predicated region
        $region13: #{tpu_custom_call.1} parent=11 // pred_check
          %p272 = pneg %p111
        $region14: #{tpu_custom_call.1} parent=11 // pred_check_branch
          %274 = sbr.rel (%p272) target = $region16
        $region15: #{tpu_custom_call.1} parent=11 // pred_region
          _
        $region16: #{tpu_custom_call.1} parent=11 // pred_fallthru
          _
        // Predicated region
        $region17: #{tpu_custom_call.1} parent=11 // pred_check
          %p275 = pneg %p132
        $region18: #{tpu_custom_call.1} parent=11 // pred_check_branch
          %277 = sbr.rel (%p275) target = $region20
        $region19: #{tpu_custom_call.1} parent=11 // pred_region
          _
        $region20: #{tpu_custom_call.1} parent=11 // pred_fallthru
          _
        // Predicated region
        $region21: #{tpu_custom_call.1} parent=11 // pred_check
          %p278 = pneg %p231
        $region22: #{tpu_custom_call.1} parent=11 // pred_check_branch
          %280 = sbr.rel (%p278) target = $region24
        $region23: #{tpu_custom_call.1} parent=11 // pred_region
          _
        $region24: #{tpu_custom_call.1} parent=11 // pred_fallthru
          _
      $region12: #{tpu_custom_call.1} parent=5 // pred_fallthru
        _
      %p281 = scmp.lt.s32.totalorder %s26, 4
      // Predicated region
      $region25: #{tpu_custom_call.1} parent=5 // pred_check
        %p282 = pneg %p281
      $region26: #{tpu_custom_call.1} parent=5 // pred_check_branch
        %284 = sbr.rel (%p282) target = $region28
      $region27: #{tpu_custom_call.1} parent=5 // pred_region
        // Predicated region
        $region29: #{tpu_custom_call.1} parent=27 // pred_check
          %p285 = pneg %p58
        $region30: #{tpu_custom_call.1} parent=27 // pred_check_branch
          %287 = sbr.rel (%p285) target = $region32
        $region31: #{tpu_custom_call.1} parent=27 // pred_region
          %s288 = sand.u32 %s48, 1
          %s289 = scalar_lea.sflag [#allocation5], %s288
          %s290 = sand.u32 %s48, 1
          %s291 = smul.addr %s290, 16
          %s292 = scalar_lea.vmem [#allocation4], %s291
          %s293 = smul.u32 2, %s33
          %295 = vsyncadd %s289, 0
          %s296 = smul.addr %s293, 8
          %s297 = scalar_lea.hbm %s0, %s296
          %s298 = sshll.u32 %s297, 4
          %s299 = int_to_ptr.hbm [resolvable:$true] %s298
          %s300 = sshll.u32 %s292, 4
          %s301 = int_to_ptr.vmem [resolvable:$true] %s300
          %306 = dma.hbm_to_vmem [thread:$0]  %s299, 256, %s301, %s289, 128, 128, 8
        $region32: #{tpu_custom_call.1} parent=27 // pred_fallthru
          _
        // Predicated region
        $region33: #{tpu_custom_call.1} parent=27 // pred_check
          %p307 = pneg %p84
        $region34: #{tpu_custom_call.1} parent=27 // pred_check_branch
          %309 = sbr.rel (%p307) target = $region36
        $region35: #{tpu_custom_call.1} parent=27 // pred_region
          %s310 = sand.u32 %s26, 1
          %s311 = scalar_lea.sflag [#allocation8], %s310
          %s312 = sand.u32 %s74, 1
          %s313 = smul.addr %s312, 16
          %s314 = scalar_lea.vmem [#allocation7], %s313
          %s315 = smul.u32 2, %s33
          %317 = vsyncadd %s311, 0
          %s318 = smul.addr %s315, 8
          %s319 = scalar_lea.hbm %s1, %s318
          %s320 = sshll.u32 %s319, 4
          %s321 = int_to_ptr.hbm [resolvable:$true] %s320
          %s322 = sshll.u32 %s314, 4
          %s323 = int_to_ptr.vmem [resolvable:$true] %s322
          %328 = dma.hbm_to_vmem [thread:$0]  %s321, 256, %s323, %s311, 128, 128, 8
        $region36: #{tpu_custom_call.1} parent=27 // pred_fallthru
          _
        // Predicated region
        $region37: #{tpu_custom_call.1} parent=27 // pred_check
          %p329 = pneg %p152
        $region38: #{tpu_custom_call.1} parent=27 // pred_check_branch
          %331 = sbr.rel (%p329) target = $region40
        $region39: #{tpu_custom_call.1} parent=27 // pred_region
          %s332 = sand.u32 %s26, 1
          %s333 = scalar_lea.sflag [#allocation8], %s332
          %s334 = sand.u32 %s142, 1
          %s335 = smul.addr %s334, 128
          %s336 = scalar_lea.vmem [#allocation9], %s335
          %338 = vsyncadd %s333, 0
          %s339 = smul.addr %s34, 8
          %s340 = scalar_lea.hbm %s4, %s339
          %s341 = sshll.u32 %s340, 4
          %s342 = int_to_ptr.hbm [resolvable:$true] %s341
          %s343 = sshll.u32 %s336, 4
          %s344 = int_to_ptr.vmem [resolvable:$true] %s343
          %349 = dma.hbm_to_vmem [thread:$0]  %s342, 2048, %s344, %s333, 256, 128, 8
        $region40: #{tpu_custom_call.1} parent=27 // pred_fallthru
          _
        // Predicated region
        $region41: #{tpu_custom_call.1} parent=27 // pred_check
          %p350 = pneg %p178
        $region42: #{tpu_custom_call.1} parent=27 // pred_check_branch
          %352 = sbr.rel (%p350) target = $region44
        $region43: #{tpu_custom_call.1} parent=27 // pred_region
          %s353 = sand.u32 %s26, 1
          %s354 = scalar_lea.sflag [#allocation11], %s353
          %s355 = sand.u32 %s168, 1
          %s356 = smul.addr %s355, 128
          %s357 = scalar_lea.vmem [#allocation10], %s356
          %359 = vsyncadd %s354, 0
          %s360 = smul.addr %s34, 8
          %s361 = scalar_lea.hbm %s5, %s360
          %s362 = sshll.u32 %s361, 4
          %s363 = int_to_ptr.hbm [resolvable:$true] %s362
          %s364 = sshll.u32 %s357, 4
          %s365 = int_to_ptr.vmem [resolvable:$true] %s364
          %370 = dma.hbm_to_vmem [thread:$0]  %s363, 2048, %s365, %s354, 256, 128, 8
        $region44: #{tpu_custom_call.1} parent=27 // pred_fallthru
          _
        // Predicated region
        $region45: #{tpu_custom_call.1} parent=27 // pred_check
          %p371 = pneg %p204
        $region46: #{tpu_custom_call.1} parent=27 // pred_check_branch
          %373 = sbr.rel (%p371) target = $region48
        $region47: #{tpu_custom_call.1} parent=27 // pred_region
          %s374 = sand.u32 %s26, 1
          %s375 = scalar_lea.sflag [#allocation11], %s374
          %s376 = sand.u32 %s194, 1
          %s377 = smul.addr %s376, 128
          %s378 = scalar_lea.vmem [#allocation12], %s377
          %s379 = smul.u32 16, %s34
          %381 = vsyncadd %s375, 0
          %s382 = smul.addr %s379, 8
          %s383 = scalar_lea.hbm %s6, %s382
          %s384 = sshll.u32 %s383, 4
          %s385 = int_to_ptr.hbm [resolvable:$true] %s384
          %s386 = sshll.u32 %s378, 4
          %s387 = int_to_ptr.vmem [resolvable:$true] %s386
          %392 = dma.hbm_to_vmem [thread:$0]  %s385, 2048, %s387, %s375, 128, 128, 8
        $region48: #{tpu_custom_call.1} parent=27 // pred_fallthru
          _
      $region28: #{tpu_custom_call.1} parent=5 // pred_fallthru
        _
      %p393 = scmp.le.s32.totalorder 1, %s26
      %p394 = scmp.lt.s32.totalorder %s26, 5
      %p395 = pnand %p393, %p394
      %p396 = pneg %p395
      // Predicated region
      $region49: #{tpu_custom_call.1} parent=5 // pred_check
        _
      $region50: #{tpu_custom_call.1} parent=5 // pred_check_branch
        %398 = sbr.rel (%p395) target = $region52
      $region51: #{tpu_custom_call.1} parent=5 // pred_region
        %s399 = ssub.s32 %s26, 1
        %s400 = sand.u32 %s51, 1
        %s401 = scalar_lea.sflag [#allocation5], %s400
        %s402 = sand.u32 %s51, 1
        %s403 = smul.addr %s402, 16
        %s404 = scalar_lea.vmem [#allocation4], %s403
        // Predicated region
        $region53: #{tpu_custom_call.1} parent=51 // pred_check
          %p405 = pneg %p64
        $region54: #{tpu_custom_call.1} parent=51 // pred_check_branch
          %407 = sbr.rel (%p405) target = $region56
        $region55: #{tpu_custom_call.1} parent=51 // pred_region
          %409 = dma.done %s401, 256
        $region56: #{tpu_custom_call.1} parent=51 // pred_fallthru
          _
        %s410 = sand.u32 %s31, 1
        %s411 = scalar_lea.sflag [#allocation8], %s410
        %s412 = sand.u32 %s77, 1
        %s413 = smul.addr %s412, 16
        %s414 = scalar_lea.vmem [#allocation7], %s413
        // Predicated region
        $region57: #{tpu_custom_call.1} parent=51 // pred_check
          %p415 = pneg %p90
        $region58: #{tpu_custom_call.1} parent=51 // pred_check_branch
          %417 = sbr.rel (%p415) target = $region60
        $region59: #{tpu_custom_call.1} parent=51 // pred_region
          %419 = dma.done %s411, 256
        $region60: #{tpu_custom_call.1} parent=51 // pred_fallthru
          _
        %s420 = sand.u32 %s31, 1
        %s421 = scalar_lea.sflag [#allocation8], %s420
        %s422 = sand.u32 %s145, 1
        %s423 = smul.addr %s422, 128
        %s424 = scalar_lea.vmem [#allocation9], %s423
        // Predicated region
        $region61: #{tpu_custom_call.1} parent=51 // pred_check
          %p425 = pneg %p158
        $region62: #{tpu_custom_call.1} parent=51 // pred_check_branch
          %427 = sbr.rel (%p425) target = $region64
        $region63: #{tpu_custom_call.1} parent=51 // pred_region
          %429 = dma.done %s421, 2048
        $region64: #{tpu_custom_call.1} parent=51 // pred_fallthru
          _
        %s430 = sand.u32 %s31, 1
        %s431 = scalar_lea.sflag [#allocation11], %s430
        %s432 = sand.u32 %s171, 1
        %s433 = smul.addr %s432, 128
        %s434 = scalar_lea.vmem [#allocation10], %s433
        // Predicated region
        $region65: #{tpu_custom_call.1} parent=51 // pred_check
          %p435 = pneg %p184
        $region66: #{tpu_custom_call.1} parent=51 // pred_check_branch
          %437 = sbr.rel (%p435) target = $region68
        $region67: #{tpu_custom_call.1} parent=51 // pred_region
          %439 = dma.done %s431, 2048
        $region68: #{tpu_custom_call.1} parent=51 // pred_fallthru
          _
        %s440 = sand.u32 %s31, 1
        %s441 = scalar_lea.sflag [#allocation11], %s440
        %s442 = sand.u32 %s197, 1
        %s443 = smul.addr %s442, 128
        %s444 = scalar_lea.vmem [#allocation12], %s443
        // Predicated region
        $region69: #{tpu_custom_call.1} parent=51 // pred_check
          %p445 = pneg %p210
        $region70: #{tpu_custom_call.1} parent=51 // pred_check_branch
          %447 = sbr.rel (%p445) target = $region72
        $region71: #{tpu_custom_call.1} parent=51 // pred_region
          %449 = dma.done %s441, 2048
        $region72: #{tpu_custom_call.1} parent=51 // pred_fallthru
          _
        %s450 = sand.u32 %s51, 1
        %s451 = scalar_lea.sflag [#allocation5], %s450
        %s452 = sand.u32 %s51, 1
        %s453 = smul.addr %s452, 16
        %s454 = scalar_lea.vmem [#allocation4], %s453
        %p455 = pneg %p64
        %p456 = pneg %p61
        %s457 = sand.u32 %s31, 1
        %s458 = scalar_lea.sflag [#allocation8], %s457
        %s459 = sand.u32 %s77, 1
        %s460 = smul.addr %s459, 16
        %s461 = scalar_lea.vmem [#allocation7], %s460
        %p462 = pneg %p90
        %p463 = pneg %p87
        %p464 = pneg %p111
        %p465 = pneg %p108
        %p466 = pneg %p132
        %p467 = pneg %p129
        %s468 = sand.u32 %s31, 1
        %s469 = scalar_lea.sflag [#allocation8], %s468
        %s470 = sand.u32 %s145, 1
        %s471 = smul.addr %s470, 128
        %s472 = scalar_lea.vmem [#allocation9], %s471
        %p473 = pneg %p158
        %p474 = pneg %p155
        %s475 = sand.u32 %s31, 1
        %s476 = scalar_lea.sflag [#allocation11], %s475
        %s477 = sand.u32 %s171, 1
        %s478 = smul.addr %s477, 128
        %s479 = scalar_lea.vmem [#allocation10], %s478
        %p480 = pneg %p184
        %p481 = pneg %p181
        %s482 = sand.u32 %s31, 1
        %s483 = scalar_lea.sflag [#allocation11], %s482
        %s484 = sand.u32 %s197, 1
        %s485 = smul.addr %s484, 128
        %s486 = scalar_lea.vmem [#allocation12], %s485
        %p487 = pneg %p210
        %p488 = pneg %p207
        %p489 = pneg %p231
        %p490 = pneg %p228
        %p491 = pneg %p257
        %p492 = pneg %p254
        %s493 = sand.u32 %s244, 1
        %s494 = scalar_lea.sflag [#allocation6], %s493
        %s495 = sand.u32 %s244, 1
        %s496 = smul.addr %s495, 16
        %s497 = scalar_lea.vmem [#allocation13], %s496
        %s498 = smul.u32 2, %s35
        %s499 = smul.u32 2, %s35
        %s500 = smul.u32 16, %s36
        %s501 = smul.u32 2, %s35
        %p502 = scmp.eq.s32.totalorder %s36, 0
        // Predicated region
        $region73: #{tpu_custom_call.1} parent=51 // pred_check
          %p503 = pneg %p502
        $region74: #{tpu_custom_call.1} parent=51 // pred_check_branch
          %505 = sbr.rel (%p503) target = $region76
        $region75: #{tpu_custom_call.1} parent=51 // pred_region
          %v506 = vld [vmem:[%s404] sm:$0xff]
          %v507 = vld [vmem:[%s404 + $0x8] sm:$0xff]
          %508 = vadd.xlane.f32.xlu0 %v506
          %v509 = vpop.xlane.xlu0 %508
          %510 = vadd.xlane.f32.xlu0 %v507
          %v511 = vpop.xlane.xlu0 %510
          %v512 = vrcp.pop 128.0
          %v513 = vmul.f32 128.0, %v512
          %v514 = vsub.f32 1.0, %v513
          %v515 = vmul.f32 %v512, %v514
          %v516 = vadd.f32 %v512, %v515
          %vm517 = vweird.f32 %v512
          %v518 = vsel %vm517, %v512, %v516
          %v519 = vmul.f32 %v509, %v518
          %v520 = vmul.f32 %v511, %v518
          %v521 = vsub.f32 %v506, %v519
          %v522 = vsub.f32 %v507, %v520
          %v523 = vmul.f32 %v521, %v521
          %v524 = vmul.f32 %v522, %v522
          %525 = vadd.xlane.f32.xlu0 %v523
          %v526 = vpop.xlane.xlu0 %525
          %527 = vadd.xlane.f32.xlu0 %v524
          %v528 = vpop.xlane.xlu0 %527
          %v529 = vmul.f32 %v526, %v518
          %v530 = vmul.f32 %v528, %v518
          %v531 = vadd.f32 %v529, 1e-05
          %v532 = vadd.f32 %v530, 1e-05
          %v533 = vrsqrt.pop %v531
          %v534 = vmul.f32 %v533, %v531
          %v535 = vmul.f32 %v534, %v533
          %v536 = vmul.f32 0.5, %v535
          %v537 = vsub.f32 1.5, %v536
          %v538 = vmul.f32 %v533, %v537
          %vm539 = vweird.f32 %v531
          %vm540 = vweird.f32 %v533
          %vm541 = vmor %vm539, %vm540
          %v542 = vsel %vm541, %v533, %v538
          %v543 = vrsqrt.pop %v532
          %v544 = vmul.f32 %v543, %v532
          %v545 = vmul.f32 %v544, %v543
          %v546 = vmul.f32 0.5, %v545
          %v547 = vsub.f32 1.5, %v546
          %v548 = vmul.f32 %v543, %v547
          %vm549 = vweird.f32 %v532
          %vm550 = vweird.f32 %v543
          %vm551 = vmor %vm549, %vm550
          %v552 = vsel %vm551, %v543, %v548
          %v553 = vmul.f32 %v521, %v542
          %v554 = vmul.f32 %v522, %v552
          %v555 = vld [vmem:[%s2] sm:$0x1]
          %v557 = vperm.slane %v555, 0
          %v559 = vmul.f32 %v553, %v557
          %v560 = vmul.f32 %v554, %v557
          %v561 = vld [vmem:[%s3] sm:$0x1]
          %v563 = vperm.slane %v561, 0
          %v565 = vadd.f32 %v559, %v563
          %v566 = vadd.f32 %v560, %v563
          %567 = vst [vmem:[#allocation2] sm:$0xff] %v565
          %568 = vst [vmem:[#allocation2 + $0x8] sm:$0xff] %v566
          %569 = vst [vmem:[#allocation3] sm:$0xff] 0.0
          %570 = vst [vmem:[#allocation3 + $0x8] sm:$0xff] 0.0
        $region76: #{tpu_custom_call.1} parent=51 // pred_fallthru
          _
        %v571 = vld [vmem:[#allocation2] sm:$0xff]
        %v572 = vld [vmem:[#allocation2 + $0x8] sm:$0xff]
        %v573 = vld [vmem:[%s424] sm:$0xff]
        %v574 = vld [vmem:[%s424 + $0x8] sm:$0xff]
        %v575 = vld [vmem:[%s424 + $0x10] sm:$0xff]
        %v576 = vld [vmem:[%s424 + $0x18] sm:$0xff]
        %v577 = vld [vmem:[%s424 + $0x20] sm:$0xff]
        %v578 = vld [vmem:[%s424 + $0x28] sm:$0xff]
        %v579 = vld [vmem:[%s424 + $0x30] sm:$0xff]
        %v580 = vld [vmem:[%s424 + $0x38] sm:$0xff]
        %v581 = vld [vmem:[%s424 + $0x40] sm:$0xff]
        %v582 = vld [vmem:[%s424 + $0x48] sm:$0xff]
        %v583 = vld [vmem:[%s424 + $0x50] sm:$0xff]
        %v584 = vld [vmem:[%s424 + $0x58] sm:$0xff]
        %v585 = vld [vmem:[%s424 + $0x60] sm:$0xff]
        %v586 = vld [vmem:[%s424 + $0x68] sm:$0xff]
        %v587 = vld [vmem:[%s424 + $0x70] sm:$0xff]
        %v588 = vld [vmem:[%s424 + $0x78] sm:$0xff]
        %589 = vmatpush.msra.mxu0 %v588
        %590 = vmatpush.msra.mxu0 %v587
        %591 = vmatpush.msra.mxu0 %v586
        %592 = vmatpush.msra.mxu0 %v585
        %593 = vmatpush.msra.mxu0 %v584
        %594 = vmatpush.msra.mxu0 %v583
        %595 = vmatpush.msra.mxu0 %v582
        %596 = vmatpush.msra.mxu0 %v581
        %597 = vmatpush.msra.mxu0 %v580
        %598 = vmatpush.msra.mxu0 %v579
        %599 = vmatpush.msra.mxu0 %v578
        %600 = vmatpush.msra.mxu0 %v577
        %601 = vmatpush.msra.mxu0 %v576
        %602 = vmatpush.msra.mxu0 %v575
        %603 = vmatpush.msra.mxu0 %v574
        %604 = vmatpush.msra.mxu0 %v573
        %605 = vmatmul.f32.gmra.mxu0 %v571
        %v606 = vpop.f32.mrf.mxu0
        %v607 = vadd.f32 0.0, %v606
        %608 = vmatmul.f32.gmra.mxu0 %v572
        %v609 = vpop.f32.mrf.mxu0
        %v610 = vadd.f32 0.0, %v609
        %611 = vdwg.mxu0
        %v612 = vxor.u32 %v607, 2147483648
        %v613 = vxor.u32 %v610, 2147483648
        %v614 = vmul.f32 %v612, 1.442695
        %v615 = vpow.pop %v614
        %v616 = vmul.f32 %v613, 1.442695
        %v617 = vpow.pop %v616
        %v618 = vadd.f32 %v615, 1.0
        %v619 = vadd.f32 %v617, 1.0
        %v620 = vrcp.pop %v618
        %v621 = vmul.f32 %v618, %v620
        %v622 = vsub.f32 1.0, %v621
        %v623 = vmul.f32 %v620, %v622
        %v624 = vadd.f32 %v620, %v623
        %vm625 = vweird.f32 %v618
        %vm626 = vweird.f32 %v620
        %vm627 = vmor %vm625, %vm626
        %v628 = vsel %vm627, %v620, %v624
        %v629 = vand.u32 2147483647, %v618
        %vm630 = vcmp.eq.f32.partialorder %v629, 8.507059e+37
        %v631 = vand.u32 %v618, 2147483648
        %v632 = vor.u32 1.1754944e-38, %v631
        %v633 = vsel %vm630, %v632, %v628
        %v634 = vmul.f32 1.0, %v633
        %v635 = vrcp.pop %v619
        %v636 = vmul.f32 %v619, %v635
        %v637 = vsub.f32 1.0, %v636
        %v638 = vmul.f32 %v635, %v637
        %v639 = vadd.f32 %v635, %v638
        %vm640 = vweird.f32 %v619
        %vm641 = vweird.f32 %v635
        %vm642 = vmor %vm640, %vm641
        %v643 = vsel %vm642, %v635, %v639
        %v644 = vand.u32 2147483647, %v619
        %vm645 = vcmp.eq.f32.partialorder %v644, 8.507059e+37
        %v646 = vand.u32 %v619, 2147483648
        %v647 = vor.u32 1.1754944e-38, %v646
        %v648 = vsel %vm645, %v647, %v643
        %v649 = vmul.f32 1.0, %v648
        %v650 = vmul.f32 %v607, %v634
        %v651 = vmul.f32 %v610, %v649
        %v652 = vld [vmem:[%s434] sm:$0xff]
        %v653 = vld [vmem:[%s434 + $0x8] sm:$0xff]
        %v654 = vld [vmem:[%s434 + $0x10] sm:$0xff]
        %v655 = vld [vmem:[%s434 + $0x18] sm:$0xff]
        %v656 = vld [vmem:[%s434 + $0x20] sm:$0xff]
        %v657 = vld [vmem:[%s434 + $0x28] sm:$0xff]
        %v658 = vld [vmem:[%s434 + $0x30] sm:$0xff]
        %v659 = vld [vmem:[%s434 + $0x38] sm:$0xff]
        %v660 = vld [vmem:[%s434 + $0x40] sm:$0xff]
        %v661 = vld [vmem:[%s434 + $0x48] sm:$0xff]
        %v662 = vld [vmem:[%s434 + $0x50] sm:$0xff]
        %v663 = vld [vmem:[%s434 + $0x58] sm:$0xff]
        %v664 = vld [vmem:[%s434 + $0x60] sm:$0xff]
        %v665 = vld [vmem:[%s434 + $0x68] sm:$0xff]
        %v666 = vld [vmem:[%s434 + $0x70] sm:$0xff]
        %v667 = vld [vmem:[%s434 + $0x78] sm:$0xff]
        %668 = vmatpush.msra.mxu0 %v667
        %669 = vmatpush.msra.mxu0 %v666
        %670 = vmatpush.msra.mxu0 %v665
        %671 = vmatpush.msra.mxu0 %v664
        %672 = vmatpush.msra.mxu0 %v663
        %673 = vmatpush.msra.mxu0 %v662
        %674 = vmatpush.msra.mxu0 %v661
        %675 = vmatpush.msra.mxu0 %v660
        %676 = vmatpush.msra.mxu0 %v659
        %677 = vmatpush.msra.mxu0 %v658
        %678 = vmatpush.msra.mxu0 %v657
        %679 = vmatpush.msra.mxu0 %v656
        %680 = vmatpush.msra.mxu0 %v655
        %681 = vmatpush.msra.mxu0 %v654
        %682 = vmatpush.msra.mxu0 %v653
        %683 = vmatpush.msra.mxu0 %v652
        %684 = vmatmul.f32.gmra.mxu0 %v571
        %v685 = vpop.f32.mrf.mxu0
        %v686 = vadd.f32 0.0, %v685
        %687 = vmatmul.f32.gmra.mxu0 %v572
        %v688 = vpop.f32.mrf.mxu0
        %v689 = vadd.f32 0.0, %v688
        %690 = vdwg.mxu0
        %v691 = vmul.f32 %v650, %v686
        %v692 = vmul.f32 %v651, %v689
        %v693 = vld [vmem:[#allocation3] sm:$0xff]
        %v694 = vld [vmem:[#allocation3 + $0x8] sm:$0xff]
        %v695 = vld [vmem:[%s444] sm:$0xff]
        %v696 = vld [vmem:[%s444 + $0x8] sm:$0xff]
        %v697 = vld [vmem:[%s444 + $0x10] sm:$0xff]
        %v698 = vld [vmem:[%s444 + $0x18] sm:$0xff]
        %v699 = vld [vmem:[%s444 + $0x20] sm:$0xff]
        %v700 = vld [vmem:[%s444 + $0x28] sm:$0xff]
        %v701 = vld [vmem:[%s444 + $0x30] sm:$0xff]
        %v702 = vld [vmem:[%s444 + $0x38] sm:$0xff]
        %v703 = vld [vmem:[%s444 + $0x40] sm:$0xff]
        %v704 = vld [vmem:[%s444 + $0x48] sm:$0xff]
        %v705 = vld [vmem:[%s444 + $0x50] sm:$0xff]
        %v706 = vld [vmem:[%s444 + $0x58] sm:$0xff]
        %v707 = vld [vmem:[%s444 + $0x60] sm:$0xff]
        %v708 = vld [vmem:[%s444 + $0x68] sm:$0xff]
        %v709 = vld [vmem:[%s444 + $0x70] sm:$0xff]
        %v710 = vld [vmem:[%s444 + $0x78] sm:$0xff]
        %711 = vmatpush.msra.mxu0 %v710
        %712 = vmatpush.msra.mxu0 %v709
        %713 = vmatpush.msra.mxu0 %v708
        %714 = vmatpush.msra.mxu0 %v707
        %715 = vmatpush.msra.mxu0 %v706
        %716 = vmatpush.msra.mxu0 %v705
        %717 = vmatpush.msra.mxu0 %v704
        %718 = vmatpush.msra.mxu0 %v703
        %719 = vmatpush.msra.mxu0 %v702
        %720 = vmatpush.msra.mxu0 %v701
        %721 = vmatpush.msra.mxu0 %v700
        %722 = vmatpush.msra.mxu0 %v699
        %723 = vmatpush.msra.mxu0 %v698
        %724 = vmatpush.msra.mxu0 %v697
        %725 = vmatpush.msra.mxu0 %v696
        %726 = vmatpush.msra.mxu0 %v695
        %727 = vmatmul.f32.gmra.mxu0 %v691
        %v728 = vpop.f32.mrf.mxu0
        %v729 = vadd.f32 0.0, %v728
        %730 = vmatmul.f32.gmra.mxu0 %v692
        %v731 = vpop.f32.mrf.mxu0
        %v732 = vadd.f32 0.0, %v731
        %733 = vdwg.mxu0
        %v734 = vadd.f32 %v693, %v729
        %v735 = vadd.f32 %v694, %v732
        %736 = vst [vmem:[#allocation3] sm:$0xff] %v734
        %737 = vst [vmem:[#allocation3 + $0x8] sm:$0xff] %v735
        %p738 = scmp.eq.s32.totalorder %s36, 1
        // Predicated region
        $region77: #{tpu_custom_call.1} parent=51 // pred_check
          %p739 = pneg %p738
        $region78: #{tpu_custom_call.1} parent=51 // pred_check_branch
          %741 = sbr.rel (%p739) target = $region80
        $region79: #{tpu_custom_call.1} parent=51 // pred_region
          %v742 = vld [vmem:[#allocation3] sm:$0xff]
          %v743 = vld [vmem:[#allocation3 + $0x8] sm:$0xff]
          %v744 = vld [vmem:[%s7] sm:$0x1]
          %v746 = vperm.slane %v744, 0
          %v748 = vmul.f32 %v742, %v746
          %v749 = vmul.f32 %v743, %v746
          %v750 = vld [vmem:[%s414] sm:$0xff]
          %v751 = vld [vmem:[%s414 + $0x8] sm:$0xff]
          %v752 = vadd.f32 %v748, %v750
          %v753 = vadd.f32 %v749, %v751
          %754 = vst [vmem:[%s497] sm:$0xff] %v752
          %755 = vst [vmem:[%s497 + $0x8] sm:$0xff] %v753
        $region80: #{tpu_custom_call.1} parent=51 // pred_fallthru
          _
        %s756 = sand.u32 %s244, 1
        %s757 = scalar_lea.sflag [#allocation6], %s756
        %s758 = sand.u32 %s244, 1
        %s759 = smul.addr %s758, 16
        %s760 = scalar_lea.vmem [#allocation13], %s759
        // Predicated region
        $region81: #{tpu_custom_call.1} parent=51 // pred_check
          %p761 = pneg %p254
        $region82: #{tpu_custom_call.1} parent=51 // pred_check_branch
          %763 = sbr.rel (%p761) target = $region84
        $region83: #{tpu_custom_call.1} parent=51 // pred_region
          %s764 = smul.u32 2, %s35
          %766 = vsyncadd %s757, 0
          %s767 = smul.addr %s764, 8
          %s768 = scalar_lea.hbm %s8, %s767
          %s769 = sshll.u32 %s760, 4
          %s770 = int_to_ptr.vmem [resolvable:$true] %s769
          %s771 = sshll.u32 %s768, 4
          %s772 = int_to_ptr.hbm [resolvable:$true] %s771
          %777 = dma.vmem_to_hbm [thread:$0]  %s770, 256, %s772, %s757, 128, 128, 8
        $region84: #{tpu_custom_call.1} parent=51 // pred_fallthru
          _
      $region52: #{tpu_custom_call.1} parent=5 // pred_fallthru
        _
      %p778 = scmp.le.s32.totalorder 2, %s26
      // Predicated region
      $region85: #{tpu_custom_call.1} parent=5 // pred_check
        %p779 = pneg %p778
      $region86: #{tpu_custom_call.1} parent=5 // pred_check_branch
        %781 = sbr.rel (%p779) target = $region88
      $region87: #{tpu_custom_call.1} parent=5 // pred_region
        %s782 = ssub.s32 %s26, 2
        // Predicated region
        $region89: #{tpu_custom_call.1} parent=87 // pred_check
          %p783 = pneg %p260
        $region90: #{tpu_custom_call.1} parent=87 // pred_check_branch
          %785 = sbr.rel (%p783) target = $region92
        $region91: #{tpu_custom_call.1} parent=87 // pred_region
          %s786 = sand.u32 %s245, 1
          %s787 = scalar_lea.sflag [#allocation6], %s786
          %s788 = sand.u32 %s245, 1
          %s789 = smul.addr %s788, 16
          %s790 = scalar_lea.vmem [#allocation13], %s789
          %792 = dma.done %s787, 256
        $region92: #{tpu_custom_call.1} parent=87 // pred_fallthru
          _
      $region88: #{tpu_custom_call.1} parent=5 // pred_fallthru
        _
    $region6: #{tpu_custom_call.1} parent=1 // loop_footer
      %s30 = sadd.s32 1, %s26
    $region7: #{tpu_custom_call.1} parent=1 // loop_footer_branch
      %25 = sbr.rel target = $region3
    $region8: #{tpu_custom_call.1} parent=1 // loop_exit
      _
    %793 = vsyncpa [#allocation5], 1
    %s794 = scalar_lea.sflag [#allocation5], 1
    %795 = vsyncpa %s794, 1
    %796 = vsyncpa [#allocation8], 1
    %s797 = scalar_lea.sflag [#allocation8], 1
    %798 = vsyncpa %s797, 1
    %799 = vsyncpa [#allocation11], 1
    %s800 = scalar_lea.sflag [#allocation11], 1
    %801 = vsyncpa %s800, 1
    %802 = vsyncpa [#allocation6], 1
    %s803 = scalar_lea.sflag [#allocation6], 1
    %804 = vsyncpa %s803, 1

</llo_original>
